<compile_context>
chip_gen: v5e
topology: v5e:2x2
jax: 0.10.0
libtpu: 0.0.40
codegen_flags: <defaults>
</compile_context>

<pallas_src>
import jax
import jax.numpy as jnp
from jax.experimental import pallas as pl
from jax.experimental.pallas import tpu as pltpu

EPS = 1e-6  # DiceLoss.__init__ sets self.eps = 1e-6 and passes it to dice_loss


def _cdiv(a, b):
    return -(-a // b)


def _dice_inter_kernel(logits_ref, targets_ref, acc_ref):
    """Accumulate, per (batch, hw-slice), the row-block sum of softmax(x)[target].

    logits_ref : (1, C, R, 128)  model dtype, upcast per class slab
    targets_ref: (1, 1, R, 128)  int8/int32 class ids; -1 on padded pixels
    acc_ref    : (1, 1, 1, 128)  f32, resident across the row-block grid axis
    """
    # acc block is resident across grid axis 2; init on the first row-block.
    @pl.when(pl.program_id(2) == 0)
    def _init():
        acc_ref[...] = jnp.zeros_like(acc_ref)

    num_classes = logits_ref.shape[1]
    t = targets_ref[0, 0].astype(jnp.int32)                      # (R, 128)

    # Pass 1: running max over classes on pixel-dense (R, 128) vregs.
    m = logits_ref[0, 0].astype(jnp.float32)
    for c in range(1, num_classes):
        m = jnp.maximum(m, logits_ref[0, c].astype(jnp.float32))

    # Pass 2: streaming exp-sum and target-class exp (data already in VMEM).
    s = jnp.zeros_like(m)
    num = jnp.zeros_like(m)
    for c in range(num_classes):
        e = jnp.exp(logits_ref[0, c].astype(jnp.float32) - m)
        s = s + e
        num = num + jnp.where(t == c, e, 0.0)

    # One exact divide per pixel (keeps the 1e-5 tolerance; approx reciprocal
    # would add ~1e-4 rel error), then sublane-reduce (XLU) to a lane-dense
    # (1, 128) partial accumulated into the resident output block.
    acc_ref[0, 0] += jnp.sum(num / s, axis=0, keepdims=True)


def _choose_block_rows(n_rows, n_par, num_classes, logit_itemsize, tgt_itemsize,
                       step_budget_bytes=10 << 20):
    """Rows of 128 pixels per grid step, from an explicit per-step VMEM budget.

    Per 128-lane row a step costs: double-buffered logits + targets blocks plus
    ~6 f32 temporaries (m, e, s, num, select, ratio). Budget of ~10 MiB keeps
    the kernel under every generation's scoped-VMEM default with headroom.
    """
    per_row = 128 * (2 * num_classes * logit_itemsize + 2 * tgt_itemsize + 6 * 4)
    r = int(step_budget_bytes // per_row)
    r = max(32, (r // 32) * 32)            # multiple of 32 covers f32/bf16/int8 tiling
    per_par = _cdiv(n_rows, n_par)
    r = min(r, _cdiv(per_par, 32) * 32)    # don't exceed (padded) rows per slice
    return int(r)


def dice_loss_pallas(logits_nchw, targets, eps=EPS, block_rows=None, hw_split=None):
    B, C, H, W = logits_nchw.shape
    HW = H * W
    logit_itemsize = jnp.dtype(logits_nchw.dtype).itemsize

    # Targets as int8 on the wire when the class count allows (upcast in-kernel).
    tgt_dtype = jnp.int8 if C <= 127 else jnp.int32
    tgt_itemsize = jnp.dtype(tgt_dtype).itemsize

    n_rows_raw = _cdiv(HW, 128)            # 128-pixel rows before block padding

    # 2-way HW split feeds both v7x TensorCores when the batch axis alone can't;
    # neutral on single-TC v5e/v6e, skipped for tiny inputs to avoid padding.
    if hw_split is None:
        hw_split = 2 if (B == 1 and n_rows_raw >= 64) else 1
    n_par = int(hw_split)

    if block_rows is None:
        block_rows = _choose_block_rows(n_rows_raw, n_par, C,
                                        logit_itemsize, tgt_itemsize)
    R = int(block_rows)
    assert R % 32 == 0, "block_rows must be a multiple of 32"

    steps_per_par = _cdiv(_cdiv(n_rows_raw, n_par), R)
    n_rows = n_par * steps_per_par * R
    HW_pad = n_rows * 128

    logits = logits_nchw.reshape(B, C, HW)
    tgt = targets.reshape(B, 1, HW).astype(tgt_dtype)
    if HW_pad != HW:
        # Padded pixels get target = -1 (never matches any class) so they add 0
        # to the intersection; cardinality below uses the true H*W analytically.
        logits = jnp.pad(logits, ((0, 0), (0, 0), (0, HW_pad - HW)))
        tgt = jnp.pad(tgt, ((0, 0), (0, 0), (0, HW_pad - HW)), constant_values=-1)
    logits = logits.reshape(B, C, n_rows, 128)
    tgt = tgt.reshape(B, 1, n_rows, 128)

    # Explicit VMEM accounting (same formula as the tile choice) + slack; floor
    # at 16 MiB. Portable across v5e (16 MiB scoped default) / v6e / v7x (64 MiB
    # physical, 32 MiB scoped default).
    block_bytes = R * 128 * (2 * C * logit_itemsize + 2 * tgt_itemsize + 6 * 4)
    vmem_limit = int(max(block_bytes + (4 << 20), 16 << 20))

    acc = pl.pallas_call(
        _dice_inter_kernel,
        out_shape=jax.ShapeDtypeStruct((B, n_par, 1, 128), jnp.float32),
        grid_spec=pltpu.PrefetchScalarGridSpec(
            num_scalar_prefetch=0,
            grid=(B, n_par, steps_per_par),
            in_specs=[
                pl.BlockSpec((1, C, R, 128),
                             lambda b, p, i: (b, 0, p * steps_per_par + i, 0)),
                pl.BlockSpec((1, 1, R, 128),
                             lambda b, p, i: (b, 0, p * steps_per_par + i, 0)),
            ],
            out_specs=pl.BlockSpec((1, 1, 1, 128),
                                   lambda b, p, i: (b, p, 0, 0)),
        ),
        compiler_params=pltpu.CompilerParams(
            dimension_semantics=("parallel", "parallel", "arbitrary"),
            vmem_limit_bytes=vmem_limit),
    )(logits, tgt)

    # Tiny epilogue (O(B * n_par * 128) flops): finish the lane reduction, dice
    # score and batch mean. cardinality == 2*H*W analytically because softmax and
    # one-hot each sum to 1 over the class axis (assumes labels in [0, C), as the
    # PyTorch scatter-based one-hot also requires).
    inter = jnp.sum(acc, axis=(1, 2, 3))                         # (B,)
    dice = 2.0 * inter / (2.0 * HW + eps)
    return jnp.mean(1.0 - dice)


def dice_loss_ref(logits_nchw, targets, eps=EPS):
    # Pure-JAX mirror of the PyTorch reference, for a silent sanity check.
    soft = jax.nn.softmax(logits_nchw.astype(jnp.float32), axis=1)
    onehot = jax.nn.one_hot(targets, logits_nchw.shape[1], axis=1,
                            dtype=jnp.float32)
    inter = jnp.sum(soft * onehot, axis=(1, 2, 3))
    card = jnp.sum(soft + onehot, axis=(1, 2, 3))
    dice = 2.0 * inter / (card + eps)
    return jnp.mean(1.0 - dice)


if __name__ == "__main__":
    key = jax.random.PRNGKey(0)
    k1, k2, k3, k4 = jax.random.split(key, 4)

    # Case 1: the module's canonical small shape (B=2, C=4, 16x16).
    B, C, H, W = 2, 4, 16, 16
    logits = jax.random.normal(k1, (B, C, H, W), dtype=jnp.float32)
    targets = jax.random.randint(k2, (B, H, W), 0, C, dtype=jnp.int32)
    loss = dice_loss_pallas(logits, targets)
    jax.block_until_ready(loss)
    ref = dice_loss_ref(logits, targets)
    assert jnp.allclose(loss, ref, atol=1e-5, rtol=1e-5), (loss, ref)

    # Case 2: B=1 exercises the 2-way HW "parallel" split (v7x dual-TC path),
    # the pl.when accumulation over multiple row-block steps, and HW padding.
    B2, C2, H2, W2 = 1, 3, 96, 96
    logits2 = jax.random.normal(k3, (B2, C2, H2, W2), dtype=jnp.float32)
    targets2 = jax.random.randint(k4, (B2, H2, W2), 0, C2, dtype=jnp.int32)
    loss2 = dice_loss_pallas(logits2, targets2, block_rows=32)
    jax.block_until_ready(loss2)
    ref2 = dice_loss_ref(logits2, targets2)
    assert jnp.allclose(loss2, ref2, atol=1e-5, rtol=1e-5), (loss2, ref2)

    print("KERNEL_OK")
</pallas_src>

<mosaic_0001>
module attributes {stable_mosaic.version = 11 : i64} {
  func.func @_dice_inter_kernel(%arg0: i32, %arg1: i32, %arg2: i32, %arg3: memref<1x4x32x128xf32, #tpu.memory_space<vmem>>, %arg4: memref<1x1x32x128xi8, #tpu.memory_space<vmem>>, %arg5: memref<1x1x1x128xf32, #tpu.memory_space<vmem>>) attributes {dimension_semantics = [#tpu.dimension_semantics<parallel>, #tpu.dimension_semantics<parallel>, #tpu.dimension_semantics<arbitrary>], iteration_bounds = array<i64: 2, 1, 1>, scalar_prefetch = 0 : i64, scratch_operands = 0 : i64, tpu.core_type = #tpu.core_type<tc>, window_params = [{transform_indices = @transform_0, window_bounds = array<i64: 1, 4, 32, 128>}, {transform_indices = @transform_1, window_bounds = array<i64: 1, 1, 32, 128>}, {transform_indices = @transform_2, window_bounds = array<i64: 1, 1, 1, 128>}]} {
    %c0_i32 = arith.constant 0 : i32
    %0 = arith.cmpi eq, %arg2, %c0_i32 : i32
    %1 = arith.extui %0 : i1 to i32
    %c0_i32_0 = arith.constant 0 : i32
    %2 = arith.cmpi ne, %1, %c0_i32_0 : i32
    scf.if %2 {
      %cst_48 = arith.constant 0.000000e+00 : f32
      %68 = vector.broadcast %cst_48 : f32 to vector<1x1x1x128xf32>
      %c0_49 = arith.constant 0 : index
      %c0_50 = arith.constant 0 : index
      %c0_51 = arith.constant 0 : index
      %c0_52 = arith.constant 0 : index
      %69 = vector.load %arg5[%c0_49, %c0_50, %c0_51, %c0_52] : memref<1x1x1x128xf32, #tpu.memory_space<vmem>>, vector<1x1x1x128xf32>
      tpu.vector_store %arg5[%c0_49, %c0_50, %c0_51, %c0_52], %68 {strides = array<i32>} : memref<1x1x1x128xf32, #tpu.memory_space<vmem>>, vector<1x1x1x128xf32>,
    } else {
    }
    %c0 = arith.constant 0 : index
    %c0_1 = arith.constant 0 : index
    %c0_2 = arith.constant 0 : index
    %c0_3 = arith.constant 0 : index
    %3 = vector.load %arg4[%c0, %c0_1, %c0_2, %c0_3] : memref<1x1x32x128xi8, #tpu.memory_space<vmem>>, vector<1x1x32x128xi8>
    %4 = vector.shape_cast %3 : vector<1x1x32x128xi8> to vector<32x128xi8>
    %5 = arith.extsi %4 : vector<32x128xi8> to vector<32x128xi32>
    %c0_4 = arith.constant 0 : index
    %c0_5 = arith.constant 0 : index
    %c0_6 = arith.constant 0 : index
    %c0_7 = arith.constant 0 : index
    %6 = vector.load %arg3[%c0_4, %c0_5, %c0_6, %c0_7] : memref<1x4x32x128xf32, #tpu.memory_space<vmem>>, vector<1x1x32x128xf32>
    %7 = vector.shape_cast %6 : vector<1x1x32x128xf32> to vector<32x128xf32>
    %c0_8 = arith.constant 0 : index
    %c1 = arith.constant 1 : index
    %c0_9 = arith.constant 0 : index
    %c0_10 = arith.constant 0 : index
    %8 = vector.load %arg3[%c0_8, %c1, %c0_9, %c0_10] : memref<1x4x32x128xf32, #tpu.memory_space<vmem>>, vector<1x1x32x128xf32>
    %9 = vector.shape_cast %8 : vector<1x1x32x128xf32> to vector<32x128xf32>
    %10 = arith.maximumf %7, %9 : vector<32x128xf32>
    %c0_11 = arith.constant 0 : index
    %c2 = arith.constant 2 : index
    %c0_12 = arith.constant 0 : index
    %c0_13 = arith.constant 0 : index
    %11 = vector.load %arg3[%c0_11, %c2, %c0_12, %c0_13] : memref<1x4x32x128xf32, #tpu.memory_space<vmem>>, vector<1x1x32x128xf32>
    %12 = vector.shape_cast %11 : vector<1x1x32x128xf32> to vector<32x128xf32>
    %13 = arith.maximumf %10, %12 : vector<32x128xf32>
    %c0_14 = arith.constant 0 : index
    %c3 = arith.constant 3 : index
    %c0_15 = arith.constant 0 : index
    %c0_16 = arith.constant 0 : index
    %14 = vector.load %arg3[%c0_14, %c3, %c0_15, %c0_16] : memref<1x4x32x128xf32, #tpu.memory_space<vmem>>, vector<1x1x32x128xf32>
    %15 = vector.shape_cast %14 : vector<1x1x32x128xf32> to vector<32x128xf32>
    %16 = arith.maximumf %13, %15 : vector<32x128xf32>
    %cst = arith.constant 0.000000e+00 : f32
    %17 = vector.broadcast %cst : f32 to vector<32x128xf32>
    %cst_17 = arith.constant 0.000000e+00 : f32
    %18 = vector.broadcast %cst_17 : f32 to vector<32x128xf32>
    %c0_18 = arith.constant 0 : index
    %c0_19 = arith.constant 0 : index
    %c0_20 = arith.constant 0 : index
    %c0_21 = arith.constant 0 : index
    %19 = vector.load %arg3[%c0_18, %c0_19, %c0_20, %c0_21] : memref<1x4x32x128xf32, #tpu.memory_space<vmem>>, vector<1x1x32x128xf32>
    %20 = vector.shape_cast %19 : vector<1x1x32x128xf32> to vector<32x128xf32>
    %21 = arith.subf %20, %16 : vector<32x128xf32>
    %22 = math.exp %21 : vector<32x128xf32>
    %23 = arith.addf %17, %22 : vector<32x128xf32>
    %c0_i32_22 = arith.constant 0 : i32
    %24 = vector.broadcast %c0_i32_22 : i32 to vector<32x128xi32>
    %25 = arith.cmpi eq, %5, %24 : vector<32x128xi32>
    %cst_23 = arith.constant 0.000000e+00 : f32
    %26 = vector.broadcast %cst_23 : f32 to vector<32x128xf32>
    %27 = arith.select %25, %22, %26 : vector<32x128xi1>, vector<32x128xf32>
    %28 = arith.addf %18, %27 : vector<32x128xf32>
    %c0_24 = arith.constant 0 : index
    %c1_25 = arith.constant 1 : index
    %c0_26 = arith.constant 0 : index
    %c0_27 = arith.constant 0 : index
    %29 = vector.load %arg3[%c0_24, %c1_25, %c0_26, %c0_27] : memref<1x4x32x128xf32, #tpu.memory_space<vmem>>, vector<1x1x32x128xf32>
    %30 = vector.shape_cast %29 : vector<1x1x32x128xf32> to vector<32x128xf32>
    %31 = arith.subf %30, %16 : vector<32x128xf32>
    %32 = math.exp %31 : vector<32x128xf32>
    %33 = arith.addf %23, %32 : vector<32x128xf32>
    %c1_i32 = arith.constant 1 : i32
    %34 = vector.broadcast %c1_i32 : i32 to vector<32x128xi32>
    %35 = arith.cmpi eq, %5, %34 : vector<32x128xi32>
    %cst_28 = arith.constant 0.000000e+00 : f32
    %36 = vector.broadcast %cst_28 : f32 to vector<32x128xf32>
    %37 = arith.select %35, %32, %36 : vector<32x128xi1>, vector<32x128xf32>
    %38 = arith.addf %28, %37 : vector<32x128xf32>
    %c0_29 = arith.constant 0 : index
    %c2_30 = arith.constant 2 : index
    %c0_31 = arith.constant 0 : index
    %c0_32 = arith.constant 0 : index
    %39 = vector.load %arg3[%c0_29, %c2_30, %c0_31, %c0_32] : memref<1x4x32x128xf32, #tpu.memory_space<vmem>>, vector<1x1x32x128xf32>
    %40 = vector.shape_cast %39 : vector<1x1x32x128xf32> to vector<32x128xf32>
    %41 = arith.subf %40, %16 : vector<32x128xf32>
    %42 = math.exp %41 : vector<32x128xf32>
    %43 = arith.addf %33, %42 : vector<32x128xf32>
    %c2_i32 = arith.constant 2 : i32
    %44 = vector.broadcast %c2_i32 : i32 to vector<32x128xi32>
    %45 = arith.cmpi eq, %5, %44 : vector<32x128xi32>
    %cst_33 = arith.constant 0.000000e+00 : f32
    %46 = vector.broadcast %cst_33 : f32 to vector<32x128xf32>
    %47 = arith.select %45, %42, %46 : vector<32x128xi1>, vector<32x128xf32>
    %48 = arith.addf %38, %47 : vector<32x128xf32>
    %c0_34 = arith.constant 0 : index
    %c3_35 = arith.constant 3 : index
    %c0_36 = arith.constant 0 : index
    %c0_37 = arith.constant 0 : index
    %49 = vector.load %arg3[%c0_34, %c3_35, %c0_36, %c0_37] : memref<1x4x32x128xf32, #tpu.memory_space<vmem>>, vector<1x1x32x128xf32>
    %50 = vector.shape_cast %49 : vector<1x1x32x128xf32> to vector<32x128xf32>
    %51 = arith.subf %50, %16 : vector<32x128xf32>
    %52 = math.exp %51 : vector<32x128xf32>
    %53 = arith.addf %43, %52 : vector<32x128xf32>
    %c3_i32 = arith.constant 3 : i32
    %54 = vector.broadcast %c3_i32 : i32 to vector<32x128xi32>
    %55 = arith.cmpi eq, %5, %54 : vector<32x128xi32>
    %cst_38 = arith.constant 0.000000e+00 : f32
    %56 = vector.broadcast %cst_38 : f32 to vector<32x128xf32>
    %57 = arith.select %55, %52, %56 : vector<32x128xi1>, vector<32x128xf32>
    %58 = arith.addf %48, %57 : vector<32x128xf32>
    %c0_39 = arith.constant 0 : index
    %c0_40 = arith.constant 0 : index
    %c0_41 = arith.constant 0 : index
    %c0_42 = arith.constant 0 : index
    %59 = vector.load %arg5[%c0_39, %c0_40, %c0_41, %c0_42] : memref<1x1x1x128xf32, #tpu.memory_space<vmem>>, vector<1x1x1x128xf32>
    %60 = vector.shape_cast %59 : vector<1x1x1x128xf32> to vector<1x128xf32>
    %61 = arith.divf %58, %53 : vector<32x128xf32>
    %cst_43 = arith.constant dense<0.000000e+00> : vector<128xf32>
    %62 = vector.multi_reduction <add>, %61, %cst_43 [0] : vector<32x128xf32> to vector<128xf32>
    %63 = vector.shape_cast %62 : vector<128xf32> to vector<1x128xf32>
    %64 = arith.addf %60, %63 : vector<1x128xf32>
    %c0_44 = arith.constant 0 : index
    %c0_45 = arith.constant 0 : index
    %c0_46 = arith.constant 0 : index
    %c0_47 = arith.constant 0 : index
    %65 = vector.load %arg5[%c0_44, %c0_45, %c0_46, %c0_47] : memref<1x1x1x128xf32, #tpu.memory_space<vmem>>, vector<1x1x1x128xf32>
    %66 = vector.shape_cast %65 : vector<1x1x1x128xf32> to vector<1x128xf32>
    %67 = vector.shape_cast %64 : vector<1x128xf32> to vector<1x1x1x128xf32>
    tpu.vector_store %arg5[%c0_44, %c0_45, %c0_46, %c0_47], %67 {strides = array<i32>} : memref<1x1x1x128xf32, #tpu.memory_space<vmem>>, vector<1x1x1x128xf32>,
    return
  }
  func.func @transform_0(%arg0: i32, %arg1: i32, %arg2: i32) -> (i32, i32, i32, i32) {
    %c1_i32 = arith.constant 1 : i32
    %0 = arith.muli %arg1, %c1_i32 : i32
    %1 = arith.addi %0, %arg2 : i32
    %c0_i32 = arith.constant 0 : i32
    %c0_i32_0 = arith.constant 0 : i32
    %c0_i32_1 = arith.constant 0 : i32
    return %arg0, %c0_i32, %1, %c0_i32_0 : i32, i32, i32, i32
  }
  func.func @transform_1(%arg0: i32, %arg1: i32, %arg2: i32) -> (i32, i32, i32, i32) {
    %c1_i32 = arith.constant 1 : i32
    %0 = arith.muli %arg1, %c1_i32 : i32
    %1 = arith.addi %0, %arg2 : i32
    %c0_i32 = arith.constant 0 : i32
    %c0_i32_0 = arith.constant 0 : i32
    %c0_i32_1 = arith.constant 0 : i32
    return %arg0, %c0_i32, %1, %c0_i32_0 : i32, i32, i32, i32
  }
  func.func @transform_2(%arg0: i32, %arg1: i32, %arg2: i32) -> (i32, i32, i32, i32) {
    %c0_i32 = arith.constant 0 : i32
    %c0_i32_0 = arith.constant 0 : i32
    %c0_i32_1 = arith.constant 0 : i32
    return %arg0, %arg1, %c0_i32, %c0_i32_0 : i32, i32, i32, i32
  }
}

</mosaic_0001>

<llo_original>
// kernel: tpu_custom_call.1
$region0: #{tpu_custom_call.1}
  #allocation0 [shape = 'u32[]', space=smem, size = 0x4, offset = 0x4, fixed_abs, tag = 'smem constant byte address 0x4 - core index']
  #allocation1 [shape = 'u32[72,128]{1,0:T(1,128)}', space=vmem, size = 0x9000, scoped, tag = 'internal scratch']
  %s0 = inlined_call_operand.hbm [shape: f32[2,4,32,128], index: 0, kind: input, shape index: {}]
  %s1 = inlined_call_operand.hbm [shape: s8[2,1,32,128], index: 1, kind: input, shape index: {}]
  %s2 = inlined_call_operand.hbm [shape: f32[2,1,1,128], index: 2, kind: output, shape index: {}]
  %s3 = sld [smem:[#allocation0]]
  $region53: #{tpu_custom_call.1} parent=0
    _
  %s5 = ssub.s32 1, %s3
  %s6 = scalar_select 0, %s5, %s3
  $region1: #{tpu_custom_call.1} parent=0
    #allocation2 [shape = 'u8[131072]{0}', space=vmem, size = 0x20000, scoped, tag = 'input window, operand 0']
    #allocation3 [shape = 's32[2]{0}', space=sflag, size = 0x8, scoped, tag = 'scoped memory for tpu_custom_call.1']
    #allocation4 [shape = 's32[2]{0}', space=sflag, size = 0x8, scoped, tag = 'scoped memory for tpu_custom_call.1']
    #allocation5 [shape = 'u8[8192]{0}', space=vmem, size = 0x2000, scoped, tag = 'input window, operand 1']
    #allocation6 [shape = 's32[2]{0}', space=sflag, size = 0x8, scoped, tag = 'scoped memory for tpu_custom_call.1']
    #allocation7 [shape = 'u8[1024]{0}', space=vmem, size = 0x400, scoped, tag = 'output window, operand 0']
    %7 = vsyncpa [#allocation3], 0
    %s8 = scalar_lea.sflag [#allocation3], 1
    %9 = vsyncpa %s8, 0
    %10 = vsyncpa [#allocation6], 0
    %s11 = scalar_lea.sflag [#allocation6], 1
    %12 = vsyncpa %s11, 0
    %13 = vsyncpa [#allocation4], 0
    %s14 = scalar_lea.sflag [#allocation4], 1
    %15 = vsyncpa %s14, 0
    loop: start=0, step=1, limit=4
    $region2: #{tpu_custom_call.1} parent=1 // loop_pre_header
      _
    $region3: #{tpu_custom_call.1} parent=1 // loop_header
      %s17 = sphi 0, %s21
      %p18 = scmp.ge.s32.totalorder %s17, 4
      %s24 = sphi 0, %s43
      %s25 = sphi 0, %s39
      %s26 = sphi 0, %s35
      %s27 = sphi 0, %s24
      %s28 = sphi 0, %s25
      %s29 = sphi 0, %s26
      %s30 = sphi 0, %s27
      %s31 = sphi 0, %s28
      %s32 = sphi 0, %s29
      %s50 = sphi 0, %s52
      %s53 = sphi 0, %s50
      %s54 = sphi 0, %s53
      %s70 = sphi 0, %s54
      %s80 = sphi 0, %s82
      %s83 = sphi 0, %s80
      %s84 = sphi 0, %s83
      %s100 = sphi 0, %s84
      %s108 = sphi 0, %s110
      %s111 = sphi 0, %s108
      %s112 = sphi 0, %s111
      %s128 = sphi 0, %s112
    $region4: #{tpu_custom_call.1} parent=1 // loop_header_branch
      %20 = sbr.rel (%p18) target = $region8
    $region5: #{tpu_custom_call.1} parent=1 // loop_body
      %s22 = ssub.s32 %s17, 1
      %s23 = ssub.s32 %s17, 2
      %s33 = sadd.s32 1, %s26
      %p34 = scmp.ge.s32.totalorder %s33, 1
      %s35 = scalar_select %p34, 0, %s33
      %s36 = sadd.s32 1, %s25
      %s37 = scalar_select %p34, %s36, %s25
      %p38 = scmp.ge.s32.totalorder %s37, 1
      %s39 = scalar_select %p38, 0, %s37
      %s40 = sadd.s32 1, %s24
      %s41 = scalar_select %p38, %s40, %s24
      %p42 = scmp.ge.s32.totalorder %s41, 2
      %s43 = scalar_select %p42, 0, %s41
      %s44 = sadd.s32 %s25, %s26
      %s45 = sadd.s32 %s39, %s35
      %s46 = ssub.s32 %s24, %s43
      %s47 = ssub.s32 %s44, %s45
      %s48 = sor.u32 %s46, %s47
      %p49 = scmp.eq.s32.totalorder %s48, 0
      %s51 = sadd.s32 %s50, 1
      %s52 = scalar_select %p49, %s50, %s51
      %p55 = pneg %p49
      %p56 = scmp.eq.s32.totalorder %s17, 1
      %p57 = por %p55, %p56
      %p58 = scmp.ne.s32.totalorder %s50, %s53
      %p59 = scmp.eq.s32.totalorder %s17, 0
      %p60 = por %p58, %p59
      %p61 = scmp.ne.s32.totalorder %s50, %s53
      %p62 = scmp.eq.s32.totalorder %s22, 1
      %p63 = por %p61, %p62
      %p64 = scmp.ne.s32.totalorder %s53, %s54
      %p65 = scmp.eq.s32.totalorder %s22, 0
      %p66 = por %p64, %p65
      %p67 = scmp.ne.s32.totalorder %s53, %s54
      %p68 = scmp.eq.s32.totalorder %s23, 1
      %p69 = por %p67, %p68
      %p71 = scmp.ne.s32.totalorder %s54, %s70
      %p72 = scmp.eq.s32.totalorder %s23, 0
      %p73 = por %p71, %p72
      %s74 = sadd.s32 %s25, %s26
      %s75 = sadd.s32 %s39, %s35
      %s76 = ssub.s32 %s24, %s43
      %s77 = ssub.s32 %s74, %s75
      %s78 = sor.u32 %s76, %s77
      %p79 = scmp.eq.s32.totalorder %s78, 0
      %s81 = sadd.s32 %s80, 1
      %s82 = scalar_select %p79, %s80, %s81
      %p85 = pneg %p79
      %p86 = scmp.eq.s32.totalorder %s17, 1
      %p87 = por %p85, %p86
      %p88 = scmp.ne.s32.totalorder %s80, %s83
      %p89 = scmp.eq.s32.totalorder %s17, 0
      %p90 = por %p88, %p89
      %p91 = scmp.ne.s32.totalorder %s80, %s83
      %p92 = scmp.eq.s32.totalorder %s22, 1
      %p93 = por %p91, %p92
      %p94 = scmp.ne.s32.totalorder %s83, %s84
      %p95 = scmp.eq.s32.totalorder %s22, 0
      %p96 = por %p94, %p95
      %p97 = scmp.ne.s32.totalorder %s83, %s84
      %p98 = scmp.eq.s32.totalorder %s23, 1
      %p99 = por %p97, %p98
      %p101 = scmp.ne.s32.totalorder %s84, %s100
      %p102 = scmp.eq.s32.totalorder %s23, 0
      %p103 = por %p101, %p102
      %s104 = ssub.s32 %s24, %s43
      %s105 = ssub.s32 %s25, %s39
      %s106 = sor.u32 %s104, %s105
      %p107 = scmp.eq.s32.totalorder %s106, 0
      %s109 = sadd.s32 %s108, 1
      %s110 = scalar_select %p107, %s108, %s109
      %p113 = pneg %p107
      %p114 = scmp.eq.s32.totalorder %s17, 1
      %p115 = por %p113, %p114
      %p116 = scmp.ne.s32.totalorder %s108, %s111
      %p117 = scmp.eq.s32.totalorder %s17, 0
      %p118 = por %p116, %p117
      %p119 = scmp.ne.s32.totalorder %s108, %s111
      %p120 = scmp.eq.s32.totalorder %s22, 1
      %p121 = por %p119, %p120
      %p122 = scmp.ne.s32.totalorder %s111, %s112
      %p123 = scmp.eq.s32.totalorder %s22, 0
      %p124 = por %p122, %p123
      %p125 = scmp.ne.s32.totalorder %s111, %s112
      %p126 = scmp.eq.s32.totalorder %s23, 1
      %p127 = por %p125, %p126
      %p129 = scmp.ne.s32.totalorder %s112, %s128
      %p130 = scmp.eq.s32.totalorder %s23, 0
      %p131 = por %p129, %p130
      %p132 = scmp.le.s32.totalorder 1, %s17
      %p133 = scmp.lt.s32.totalorder %s17, 3
      %p134 = pnand %p132, %p133
      %p135 = pneg %p134
      // Predicated region
      $region9: #{tpu_custom_call.1} parent=5 // pred_check
        _
      $region10: #{tpu_custom_call.1} parent=5 // pred_check_branch
        %137 = sbr.rel (%p134) target = $region12
      $region11: #{tpu_custom_call.1} parent=5 // pred_region
        %s138 = ssub.s32 %s17, 1
      $region12: #{tpu_custom_call.1} parent=5 // pred_fallthru
        _
      %p139 = scmp.lt.s32.totalorder %s17, 2
      // Predicated region
      $region13: #{tpu_custom_call.1} parent=5 // pred_check
        %p140 = pneg %p139
      $region14: #{tpu_custom_call.1} parent=5 // pred_check_branch
        %142 = sbr.rel (%p140) target = $region16
      $region15: #{tpu_custom_call.1} parent=5 // pred_region
        // Predicated region
        $region17: #{tpu_custom_call.1} parent=15 // pred_check
          %p143 = pneg %p60
        $region18: #{tpu_custom_call.1} parent=15 // pred_check_branch
          %145 = sbr.rel (%p143) target = $region20
        $region19: #{tpu_custom_call.1} parent=15 // pred_region
          %s146 = sand.u32 %s50, 1
          %s147 = scalar_lea.sflag [#allocation3], %s146
          %s148 = sand.u32 %s50, 1
          %s149 = smul.addr %s148, 128
          %s150 = scalar_lea.vmem [#allocation2], %s149
          %s151 = sadd.s32 %s25, %s26
          %s152 = smul.u32 4, %s151
          %154 = vsyncadd %s147, 0
          %s155 = smul.addr %s24, 16
          %s156 = sadd.s32 %s152, %s155
          %s157 = smul.addr %s156, 8
          %s158 = scalar_lea.hbm %s0, %s157
          %s159 = sshll.u32 %s158, 4
          %s160 = int_to_ptr.hbm [resolvable:$true] %s159
          %s161 = sshll.u32 %s150, 4
          %s162 = int_to_ptr.vmem [resolvable:$true] %s161
          %167 = dma.hbm_to_vmem [thread:$0]  %s160, 2048, %s162, %s147, 128, 128, 8
        $region20: #{tpu_custom_call.1} parent=15 // pred_fallthru
          _
        // Predicated region
        $region21: #{tpu_custom_call.1} parent=15 // pred_check
          %p168 = pneg %p90
        $region22: #{tpu_custom_call.1} parent=15 // pred_check_branch
          %170 = sbr.rel (%p168) target = $region24
        $region23: #{tpu_custom_call.1} parent=15 // pred_region
          %s171 = sand.u32 %s80, 1
          %s172 = scalar_lea.sflag [#allocation6], %s171
          %s173 = sand.u32 %s80, 1
          %s174 = smul.addr %s173, 8
          %s175 = scalar_lea.vmem [#allocation5], %s174
          %s176 = sadd.s32 %s25, %s26
          %178 = vsyncadd %s172, 0
          %s179 = sadd.s32 %s176, %s24
          %s180 = smul.addr %s179, 8
          %s181 = scalar_lea.hbm %s1, %s180
          %s183 = sshll.u32 %s181, 4
          %s184 = int_to_ptr.hbm [resolvable:$true] %s183
          %s185 = sshll.u32 %s175, 4
          %s186 = int_to_ptr.vmem [resolvable:$true] %s185
          %188 = dma.hbm_to_vmem [thread:$0]  %s184, 128, %s186, %s172
        $region24: #{tpu_custom_call.1} parent=15 // pred_fallthru
          _
      $region16: #{tpu_custom_call.1} parent=5 // pred_fallthru
        _
      %p189 = scmp.le.s32.totalorder 1, %s17
      %p190 = scmp.lt.s32.totalorder %s17, 3
      %p191 = pnand %p189, %p190
      %p192 = pneg %p191
      // Predicated region
      $region25: #{tpu_custom_call.1} parent=5 // pred_check
        _
      $region26: #{tpu_custom_call.1} parent=5 // pred_check_branch
        %194 = sbr.rel (%p191) target = $region28
      $region27: #{tpu_custom_call.1} parent=5 // pred_region
        %s195 = ssub.s32 %s17, 1
        %s196 = sand.u32 %s53, 1
        %s197 = scalar_lea.sflag [#allocation3], %s196
        %s198 = sand.u32 %s53, 1
        %s199 = smul.addr %s198, 128
        %s200 = scalar_lea.vmem [#allocation2], %s199
        // Predicated region
        $region29: #{tpu_custom_call.1} parent=27 // pred_check
          %p201 = pneg %p66
        $region30: #{tpu_custom_call.1} parent=27 // pred_check_branch
          %203 = sbr.rel (%p201) target = $region32
        $region31: #{tpu_custom_call.1} parent=27 // pred_region
          %205 = dma.done %s197, 2048
        $region32: #{tpu_custom_call.1} parent=27 // pred_fallthru
          _
        %s206 = sand.u32 %s83, 1
        %s207 = scalar_lea.sflag [#allocation6], %s206
        %s208 = sand.u32 %s83, 1
        %s209 = smul.addr %s208, 8
        %s210 = scalar_lea.vmem [#allocation5], %s209
        // Predicated region
        $region33: #{tpu_custom_call.1} parent=27 // pred_check
          %p211 = pneg %p96
        $region34: #{tpu_custom_call.1} parent=27 // pred_check_branch
          %213 = sbr.rel (%p211) target = $region36
        $region35: #{tpu_custom_call.1} parent=27 // pred_region
          %215 = dma.done %s207, 128
        $region36: #{tpu_custom_call.1} parent=27 // pred_fallthru
          _
        %s216 = sand.u32 %s53, 1
        %s217 = scalar_lea.sflag [#allocation3], %s216
        %s218 = sand.u32 %s53, 1
        %s219 = smul.addr %s218, 128
        %s220 = scalar_lea.vmem [#allocation2], %s219
        %p221 = pneg %p66
        %p222 = pneg %p63
        %s223 = sand.u32 %s83, 1
        %s224 = scalar_lea.sflag [#allocation6], %s223
        %s225 = sand.u32 %s83, 1
        %s226 = smul.addr %s225, 8
        %s227 = scalar_lea.vmem [#allocation5], %s226
        %p228 = pneg %p96
        %p229 = pneg %p93
        %p230 = pneg %p124
        %p231 = pneg %p121
        %s232 = sand.u32 %s111, 1
        %s233 = scalar_lea.sflag [#allocation4], %s232
        %s234 = sand.u32 %s111, 1
        %s235 = scalar_lea.vmem [#allocation7], %s234
        %s236 = sadd.s32 %s28, %s29
        %s237 = smul.u32 4, %s236
        %s238 = sadd.s32 %s28, %s29
        %p239 = scmp.eq.s32.totalorder %s29, 0
        // Predicated region
        $region37: #{tpu_custom_call.1} parent=27 // pred_check
          %p240 = pneg %p239
        $region38: #{tpu_custom_call.1} parent=27 // pred_check_branch
          %242 = sbr.rel (%p240) target = $region40
        $region39: #{tpu_custom_call.1} parent=27 // pred_region
          %243 = vst [vmem:[%s235] sm:$0x1] 0.0
        $region40: #{tpu_custom_call.1} parent=27 // pred_fallthru
          _
        %v244 = vld [vmem:[%s210] sm:$0xff]
        %v245 = vunpack.c.0.s8 %v244
        %v246 = vunpack.c.1.s8 %v244
        %v247 = vunpack.c.2.s8 %v244
        %v248 = vunpack.c.3.s8 %v244
        %v249 = vld [vmem:[%s200] sm:$0xff]
        %v250 = vld [vmem:[%s200 + $0x8] sm:$0xff]
        %v251 = vld [vmem:[%s200 + $0x10] sm:$0xff]
        %v252 = vld [vmem:[%s200 + $0x18] sm:$0xff]
        %s253 = scalar_lea.vmem %s200, 32 [#allocation2]
        %v254 = vld [vmem:[%s253] sm:$0xff]
        %v255 = vld [vmem:[%s253 + $0x8] sm:$0xff]
        %v256 = vld [vmem:[%s253 + $0x10] sm:$0xff]
        %v257 = vld [vmem:[%s253 + $0x18] sm:$0xff]
        %v258 = vmax.f32 %v249, %v254
        %v259 = vmax.f32 %v250, %v255
        %v260 = vmax.f32 %v251, %v256
        %v261 = vmax.f32 %v252, %v257
        %s262 = scalar_lea.vmem %s200, 64 [#allocation2]
        %v263 = vld [vmem:[%s262] sm:$0xff]
        %v264 = vld [vmem:[%s262 + $0x8] sm:$0xff]
        %v265 = vld [vmem:[%s262 + $0x10] sm:$0xff]
        %v266 = vld [vmem:[%s262 + $0x18] sm:$0xff]
        %v267 = vmax.f32 %v258, %v263
        %v268 = vmax.f32 %v259, %v264
        %v269 = vmax.f32 %v260, %v265
        %v270 = vmax.f32 %v261, %v266
        %s271 = scalar_lea.vmem %s200, 96 [#allocation2]
        %v272 = vld [vmem:[%s271] sm:$0xff]
        %v273 = vld [vmem:[%s271 + $0x8] sm:$0xff]
        %v274 = vld [vmem:[%s271 + $0x10] sm:$0xff]
        %v275 = vld [vmem:[%s271 + $0x18] sm:$0xff]
        %v276 = vmax.f32 %v267, %v272
        %v277 = vmax.f32 %v268, %v273
        %v278 = vmax.f32 %v269, %v274
        %v279 = vmax.f32 %v270, %v275
        %v280 = vsub.f32 %v249, %v276
        %v281 = vsub.f32 %v250, %v277
        %v282 = vsub.f32 %v251, %v278
        %v283 = vsub.f32 %v252, %v279
        %v284 = vmul.f32 %v280, 1.442695
        %v285 = vpow.pop %v284
        %v286 = vmul.f32 %v281, 1.442695
        %v287 = vpow.pop %v286
        %v288 = vmul.f32 %v282, 1.442695
        %v289 = vpow.pop %v288
        %v290 = vmul.f32 %v283, 1.442695
        %v291 = vpow.pop %v290
        %v292 = vadd.f32 %v285, 0.0
        %v293 = vadd.f32 %v287, 0.0
        %v294 = vadd.f32 %v289, 0.0
        %v295 = vadd.f32 %v291, 0.0
        %vm296 = vcmp.eq.s32.totalorder %v245, 0
        %vm297 = vcmp.eq.s32.totalorder %v246, 0
        %vm298 = vcmp.eq.s32.totalorder %v247, 0
        %vm299 = vcmp.eq.s32.totalorder %v248, 0
        %v300 = vsel %vm296, %v285, 0.0
        %v301 = vsel %vm297, %v287, 0.0
        %v302 = vsel %vm298, %v289, 0.0
        %v303 = vsel %vm299, %v291, 0.0
        %v304 = vadd.f32 %v300, 0.0
        %v305 = vadd.f32 %v301, 0.0
        %v306 = vadd.f32 %v302, 0.0
        %v307 = vadd.f32 %v303, 0.0
        %v308 = vsub.f32 %v254, %v276
        %v309 = vsub.f32 %v255, %v277
        %v310 = vsub.f32 %v256, %v278
        %v311 = vsub.f32 %v257, %v279
        %v312 = vmul.f32 %v308, 1.442695
        %v313 = vpow.pop %v312
        %v314 = vmul.f32 %v309, 1.442695
        %v315 = vpow.pop %v314
        %v316 = vmul.f32 %v310, 1.442695
        %v317 = vpow.pop %v316
        %v318 = vmul.f32 %v311, 1.442695
        %v319 = vpow.pop %v318
        %v320 = vadd.f32 %v292, %v313
        %v321 = vadd.f32 %v293, %v315
        %v322 = vadd.f32 %v294, %v317
        %v323 = vadd.f32 %v295, %v319
        %vm324 = vcmp.eq.s32.totalorder %v245, 1
        %vm325 = vcmp.eq.s32.totalorder %v246, 1
        %vm326 = vcmp.eq.s32.totalorder %v247, 1
        %vm327 = vcmp.eq.s32.totalorder %v248, 1
        %v328 = vsel %vm324, %v313, 0.0
        %v329 = vsel %vm325, %v315, 0.0
        %v330 = vsel %vm326, %v317, 0.0
        %v331 = vsel %vm327, %v319, 0.0
        %v332 = vadd.f32 %v304, %v328
        %v333 = vadd.f32 %v305, %v329
        %v334 = vadd.f32 %v306, %v330
        %v335 = vadd.f32 %v307, %v331
        %v336 = vsub.f32 %v263, %v276
        %v337 = vsub.f32 %v264, %v277
        %v338 = vsub.f32 %v265, %v278
        %v339 = vsub.f32 %v266, %v279
        %v340 = vmul.f32 %v336, 1.442695
        %v341 = vpow.pop %v340
        %v342 = vmul.f32 %v337, 1.442695
        %v343 = vpow.pop %v342
        %v344 = vmul.f32 %v338, 1.442695
        %v345 = vpow.pop %v344
        %v346 = vmul.f32 %v339, 1.442695
        %v347 = vpow.pop %v346
        %v348 = vadd.f32 %v320, %v341
        %v349 = vadd.f32 %v321, %v343
        %v350 = vadd.f32 %v322, %v345
        %v351 = vadd.f32 %v323, %v347
        %vm352 = vcmp.eq.s32.totalorder %v245, 2
        %vm353 = vcmp.eq.s32.totalorder %v246, 2
        %vm354 = vcmp.eq.s32.totalorder %v247, 2
        %vm355 = vcmp.eq.s32.totalorder %v248, 2
        %v356 = vsel %vm352, %v341, 0.0
        %v357 = vsel %vm353, %v343, 0.0
        %v358 = vsel %vm354, %v345, 0.0
        %v359 = vsel %vm355, %v347, 0.0
        %v360 = vadd.f32 %v332, %v356
        %v361 = vadd.f32 %v333, %v357
        %v362 = vadd.f32 %v334, %v358
        %v363 = vadd.f32 %v335, %v359
        %v364 = vsub.f32 %v272, %v276
        %v365 = vsub.f32 %v273, %v277
        %v366 = vsub.f32 %v274, %v278
        %v367 = vsub.f32 %v275, %v279
        %v368 = vmul.f32 %v364, 1.442695
        %v369 = vpow.pop %v368
        %v370 = vmul.f32 %v365, 1.442695
        %v371 = vpow.pop %v370
        %v372 = vmul.f32 %v366, 1.442695
        %v373 = vpow.pop %v372
        %v374 = vmul.f32 %v367, 1.442695
        %v375 = vpow.pop %v374
        %v376 = vadd.f32 %v348, %v369
        %v377 = vadd.f32 %v349, %v371
        %v378 = vadd.f32 %v350, %v373
        %v379 = vadd.f32 %v351, %v375
        %vm380 = vcmp.eq.s32.totalorder %v245, 3
        %vm381 = vcmp.eq.s32.totalorder %v246, 3
        %vm382 = vcmp.eq.s32.totalorder %v247, 3
        %vm383 = vcmp.eq.s32.totalorder %v248, 3
        %v384 = vsel %vm380, %v369, 0.0
        %v385 = vsel %vm381, %v371, 0.0
        %v386 = vsel %vm382, %v373, 0.0
        %v387 = vsel %vm383, %v375, 0.0
        %v388 = vadd.f32 %v360, %v384
        %v389 = vadd.f32 %v361, %v385
        %v390 = vadd.f32 %v362, %v386
        %v391 = vadd.f32 %v363, %v387
        %v392 = vld [vmem:[%s235] sm:$0x1]
        %v393 = vrcp.pop %v376
        %v394 = vmul.f32 %v376, %v393
        %v395 = vsub.f32 1.0, %v394
        %v396 = vmul.f32 %v393, %v395
        %v397 = vadd.f32 %v393, %v396
        %vm398 = vweird.f32 %v376
        %vm399 = vweird.f32 %v393
        %vm400 = vmor %vm398, %vm399
        %v401 = vsel %vm400, %v393, %v397
        %v402 = vand.u32 2147483647, %v376
        %vm403 = vcmp.eq.f32.partialorder %v402, 8.507059e+37
        %v404 = vand.u32 %v376, 2147483648
        %v405 = vor.u32 1.1754944e-38, %v404
        %v406 = vsel %vm403, %v405, %v401
        %v407 = vmul.f32 %v388, %v406
        %v408 = vrcp.pop %v377
        %v409 = vmul.f32 %v377, %v408
        %v410 = vsub.f32 1.0, %v409
        %v411 = vmul.f32 %v408, %v410
        %v412 = vadd.f32 %v408, %v411
        %vm413 = vweird.f32 %v377
        %vm414 = vweird.f32 %v408
        %vm415 = vmor %vm413, %vm414
        %v416 = vsel %vm415, %v408, %v412
        %v417 = vand.u32 2147483647, %v377
        %vm418 = vcmp.eq.f32.partialorder %v417, 8.507059e+37
        %v419 = vand.u32 %v377, 2147483648
        %v420 = vor.u32 1.1754944e-38, %v419
        %v421 = vsel %vm418, %v420, %v416
        %v422 = vmul.f32 %v389, %v421
        %v423 = vrcp.pop %v378
        %v424 = vmul.f32 %v378, %v423
        %v425 = vsub.f32 1.0, %v424
        %v426 = vmul.f32 %v423, %v425
        %v427 = vadd.f32 %v423, %v426
        %vm428 = vweird.f32 %v378
        %vm429 = vweird.f32 %v423
        %vm430 = vmor %vm428, %vm429
        %v431 = vsel %vm430, %v423, %v427
        %v432 = vand.u32 2147483647, %v378
        %vm433 = vcmp.eq.f32.partialorder %v432, 8.507059e+37
        %v434 = vand.u32 %v378, 2147483648
        %v435 = vor.u32 1.1754944e-38, %v434
        %v436 = vsel %vm433, %v435, %v431
        %v437 = vmul.f32 %v390, %v436
        %v438 = vrcp.pop %v379
        %v439 = vmul.f32 %v379, %v438
        %v440 = vsub.f32 1.0, %v439
        %v441 = vmul.f32 %v438, %v440
        %v442 = vadd.f32 %v438, %v441
        %vm443 = vweird.f32 %v379
        %vm444 = vweird.f32 %v438
        %vm445 = vmor %vm443, %vm444
        %v446 = vsel %vm445, %v438, %v442
        %v447 = vand.u32 2147483647, %v379
        %vm448 = vcmp.eq.f32.partialorder %v447, 8.507059e+37
        %v449 = vand.u32 %v379, 2147483648
        %v450 = vor.u32 1.1754944e-38, %v449
        %v451 = vsel %vm448, %v450, %v446
        %v452 = vmul.f32 %v391, %v451
        %v453 = vadd.f32 %v407, %v422
        %v454 = vadd.f32 %v453, %v437
        %v455 = vadd.f32 %v454, %v452
        %v456 = vrot.slane %v455, 4
        %v457 = vadd.f32 %v455, %v456
        %v458 = vrot.slane %v457, 2
        %v459 = vadd.f32 %v457, %v458
        %v460 = vrot.slane %v459, 1
        %v461 = vadd.f32 %v459, %v460
        %v462 = vadd.f32 %v392, %v461
        %463 = vst [vmem:[%s235] sm:$0x1] %v462
        %s464 = sand.u32 %s111, 1
        %s465 = scalar_lea.sflag [#allocation4], %s464
        %s466 = sand.u32 %s111, 1
        %s467 = scalar_lea.vmem [#allocation7], %s466
        // Predicated region
        $region41: #{tpu_custom_call.1} parent=27 // pred_check
          %p468 = pneg %p121
        $region42: #{tpu_custom_call.1} parent=27 // pred_check_branch
          %470 = sbr.rel (%p468) target = $region44
        $region43: #{tpu_custom_call.1} parent=27 // pred_region
          %472 = vsyncadd %s465, 0
          %s473 = sadd.s32 %s28, %s27
          %s474 = scalar_lea.hbm %s2, %s473
          %s476 = sshll.u32 %s467, 4
          %s477 = int_to_ptr.vmem [resolvable:$true] %s476
          %s478 = sshll.u32 %s474, 4
          %s479 = int_to_ptr.hbm [resolvable:$true] %s478
          %481 = dma.vmem_to_hbm [thread:$0]  %s477, 16, %s479, %s465
        $region44: #{tpu_custom_call.1} parent=27 // pred_fallthru
          _
      $region28: #{tpu_custom_call.1} parent=5 // pred_fallthru
        _
      %p482 = scmp.le.s32.totalorder 2, %s17
      // Predicated region
      $region45: #{tpu_custom_call.1} parent=5 // pred_check
        %p483 = pneg %p482
      $region46: #{tpu_custom_call.1} parent=5 // pred_check_branch
        %485 = sbr.rel (%p483) target = $region48
      $region47: #{tpu_custom_call.1} parent=5 // pred_region
        %s486 = ssub.s32 %s17, 2
        // Predicated region
        $region49: #{tpu_custom_call.1} parent=47 // pred_check
          %p487 = pneg %p127
        $region50: #{tpu_custom_call.1} parent=47 // pred_check_branch
          %489 = sbr.rel (%p487) target = $region52
        $region51: #{tpu_custom_call.1} parent=47 // pred_region
          %s490 = sand.u32 %s112, 1
          %s491 = scalar_lea.sflag [#allocation4], %s490
          %s492 = sand.u32 %s112, 1
          %s493 = scalar_lea.vmem [#allocation7], %s492
          %495 = dma.done %s491, 16
        $region52: #{tpu_custom_call.1} parent=47 // pred_fallthru
          _
      $region48: #{tpu_custom_call.1} parent=5 // pred_fallthru
        _
    $region6: #{tpu_custom_call.1} parent=1 // loop_footer
      %s21 = sadd.s32 1, %s17
    $region7: #{tpu_custom_call.1} parent=1 // loop_footer_branch
      %16 = sbr.rel target = $region3
    $region8: #{tpu_custom_call.1} parent=1 // loop_exit
      _
    %496 = vsyncpa [#allocation3], 1
    %s497 = scalar_lea.sflag [#allocation3], 1
    %498 = vsyncpa %s497, 1
    %499 = vsyncpa [#allocation6], 1
    %s500 = scalar_lea.sflag [#allocation6], 1
    %501 = vsyncpa %s500, 1
    %502 = vsyncpa [#allocation4], 1
    %s503 = scalar_lea.sflag [#allocation4], 1
    %504 = vsyncpa %s503, 1

</llo_original>
